<compile_context>
chip_gen: v7x
topology: tpu7x:2x2x1
jax: 0.10.0
libtpu: 0.0.40
codegen_flags: <defaults>
</compile_context>

<pallas_src>
import math

import jax
import jax.numpy as jnp
from jax.experimental import pallas as pl
from jax.experimental.pallas import tpu as pltpu


def _adaptive_windows(in_size, out_size):
    """PyTorch AdaptiveMaxPool2d window boundaries (static Python ints)."""
    return [(int(math.floor(i * in_size / out_size)),
             int(math.ceil((i + 1) * in_size / out_size)))
            for i in range(out_size)]


def _make_spp_kernel(block_sizes, H, W):
    block_sizes = tuple(int(b) for b in block_sizes)
    b_fine = max(block_sizes)
    h_fine = _adaptive_windows(H, b_fine)
    w_fine = _adaptive_windows(W, b_fine)

    def kernel(x_ref, *out_refs):
        # x_ref block: (1, c_tile, H, W); out_refs[k] block: (1, c_tile, b_k*b_k)

        # ---- finest pyramid level: reduce directly from the VMEM tile ----
        fine = [[None] * b_fine for _ in range(b_fine)]
        for i, (h0, h1) in enumerate(h_fine):
            # row-band max over the H (sublane) axis -> (c_tile, W)
            band = jnp.max(x_ref[0, :, h0:h1, :], axis=1)
            for j, (w0, w1) in enumerate(w_fine):
                # per-window max over the W (lane) axis -> (c_tile, 1)
                fine[i][j] = jnp.max(band[:, w0:w1], axis=1, keepdims=True)

        # ---- all pyramid levels ----
        pooled = {}
        for b in block_sizes:
            if b == b_fine:
                pooled[b] = fine
            elif b_fine % b == 0:
                # Coarser adaptive windows are exact unions of the finer ones: derive them
                # from the already-computed maxima (pure VPU maxes, no extra data read).
                r = b_fine // b
                lvl = [[None] * b for _ in range(b)]
                for i in range(b):
                    for j in range(b):
                        m = fine[i * r][j * r]
                        for di in range(r):
                            for dj in range(r):
                                if di == 0 and dj == 0:
                                    continue
                                m = jnp.maximum(m, fine[i * r + di][j * r + dj])
                        lvl[i][j] = m
                pooled[b] = lvl
            else:
                # Non-nested block size: pool directly from the tile.
                hw = _adaptive_windows(H, b)
                ww = _adaptive_windows(W, b)
                lvl = [[None] * b for _ in range(b)]
                for i, (h0, h1) in enumerate(hw):
                    band = jnp.max(x_ref[0, :, h0:h1, :], axis=1)
                    for j, (w0, w1) in enumerate(ww):
                        lvl[i][j] = jnp.max(band[:, w0:w1], axis=1, keepdims=True)
                pooled[b] = lvl

        # ---- write each level with a single store, row-major over (i, j) like torch .view ----
        for k, b in enumerate(block_sizes):
            lvl = pooled[b]
            flat = [lvl[i][j] for i in range(b) for j in range(b)]      # b*b x (c_tile, 1)
            if len(flat) == 1:
                level_tile = flat[0]
            else:
                level_tile = jnp.concatenate(flat, axis=1)              # (c_tile, b*b)
            out_refs[k][0] = level_tile.astype(out_refs[k].dtype)

    return kernel


def _pick_c_tile(C, H, W, itemsize, budget_bytes=4 * 1024 * 1024):
    """Largest channel tile that divides C and keeps one input tile within a conservative
    VMEM budget (Pallas double-buffers it). Prefers multiples of 8 for sublane alignment."""
    divisors = sorted({d for d in range(1, C + 1) if C % d == 0})
    fitting = [d for d in divisors if d * H * W * itemsize <= budget_bytes]
    if not fitting:
        return divisors[0]                      # smallest divisor; best we can do
    fit8 = [d for d in fitting if d % 8 == 0]
    return max(fit8) if fit8 else max(fitting)


def spp_forward(x, block_sizes=(1, 2, 4)):
    """x: (N, C, H, W). Returns (N, C * sum(b*b for b in block_sizes))."""
    N, C, H, W = x.shape
    block_sizes = tuple(int(b) for b in block_sizes)
    c_tile = _pick_c_tile(C, H, W, x.dtype.itemsize)
    kernel = _make_spp_kernel(block_sizes, H, W)

    out_shape = tuple(jax.ShapeDtypeStruct((N, C, b * b), x.dtype) for b in block_sizes)
    in_specs = [pl.BlockSpec((1, c_tile, H, W), lambda n, c: (n, c, 0, 0))]
    out_specs = tuple(pl.BlockSpec((1, c_tile, b * b), lambda n, c: (n, c, 0))
                      for b in block_sizes)

    in_bytes = N * C * H * W * x.dtype.itemsize
    out_bytes = N * C * sum(b * b for b in block_sizes) * x.dtype.itemsize

    pools = pl.pallas_call(
        kernel,
        out_shape=out_shape,
        grid=(N, C // c_tile),
        in_specs=in_specs,
        out_specs=out_specs,
        compiler_params=pltpu.CompilerParams(
            dimension_semantics=("parallel", "parallel")),
        cost_estimate=pl.CostEstimate(
            flops=2 * N * C * H * W, transcendentals=0,
            bytes_accessed=in_bytes + out_bytes),
    )(x)

    # PyTorch order: per level, (N, C, b, b).view(N, -1), then concat over levels.
    return jnp.concatenate([p.reshape(N, -1) for p in pools], axis=1)


def spp_reference(x, block_sizes=(1, 2, 4)):
    """Pure-JAX adaptive max-pool SPP reference (matches torch AdaptiveMaxPool2d)."""
    N, C, H, W = x.shape
    outs = []
    for b in block_sizes:
        hw = _adaptive_windows(H, b)
        ww = _adaptive_windows(W, b)
        rows = []
        for (h0, h1) in hw:
            cols = [jnp.max(x[:, :, h0:h1, w0:w1], axis=(2, 3)) for (w0, w1) in ww]
            rows.append(jnp.stack(cols, axis=-1))          # (N, C, b)
        pooled = jnp.stack(rows, axis=-2)                  # (N, C, b, b)
        outs.append(pooled.reshape(N, -1))
    return jnp.concatenate(outs, axis=1)


if __name__ == "__main__":
    key = jax.random.PRNGKey(0)
    k1, k2 = jax.random.split(key)

    # Primary case: batch=2, channels=4, spatial 16x16 (evenly divisible windows).
    x = jax.random.normal(k1, (2, 4, 16, 16), jnp.float32)
    out = jax.block_until_ready(spp_forward(x))
    ref = spp_reference(x)
    assert out.shape == (2, 4 * (1 + 4 + 16))
    assert jnp.max(jnp.abs(out - ref)) < 1e-5

    # Non-divisible spatial size exercises the general adaptive-window boundaries.
    x2 = jax.random.normal(k2, (2, 8, 10, 14), jnp.float32)
    out2 = jax.block_until_ready(spp_forward(x2))
    ref2 = spp_reference(x2)
    assert out2.shape == (2, 8 * 21)
    assert jnp.max(jnp.abs(out2 - ref2)) < 1e-5

    print("KERNEL_OK")
</pallas_src>

<mosaic_0001>
module attributes {stable_mosaic.version = 11 : i64} {
  func.func @kernel(%arg0: i32, %arg1: i32, %arg2: memref<1x4x16x16xf32, #tpu.memory_space<vmem>>, %arg3: memref<1x4x1xf32, #tpu.memory_space<vmem>>, %arg4: memref<1x4x4xf32, #tpu.memory_space<vmem>>, %arg5: memref<1x4x16xf32, #tpu.memory_space<vmem>>) attributes {dimension_semantics = [#tpu.dimension_semantics<parallel>, #tpu.dimension_semantics<parallel>], iteration_bounds = array<i64: 2, 1>, scalar_prefetch = 0 : i64, scratch_operands = 0 : i64, tpu.core_type = #tpu.core_type<tc>, window_params = [{transform_indices = @transform_0, window_bounds = array<i64: 1, 4, 16, 16>}, {transform_indices = @transform_1, window_bounds = array<i64: 1, 4, 1>}, {transform_indices = @transform_2, window_bounds = array<i64: 1, 4, 4>}, {transform_indices = @transform_3, window_bounds = array<i64: 1, 4, 16>}]} {
    %c0 = arith.constant 0 : index
    %c0_0 = arith.constant 0 : index
    %c0_1 = arith.constant 0 : index
    %c0_2 = arith.constant 0 : index
    %0 = vector.load %arg2[%c0, %c0_0, %c0_1, %c0_2] : memref<1x4x16x16xf32, #tpu.memory_space<vmem>>, vector<1x4x4x16xf32>
    %1 = vector.shape_cast %0 : vector<1x4x4x16xf32> to vector<4x4x16xf32>
    %cst = arith.constant dense<0xFF800000> : vector<4x16xf32>
    %2 = vector.multi_reduction <maximumf>, %1, %cst [1] : vector<4x4x16xf32> to vector<4x16xf32>
    %3 = vector.extract_strided_slice %2 {offsets = [0, 0], sizes = [4, 4], strides = [1, 1]} : vector<4x16xf32> to vector<4x4xf32>
    %cst_3 = arith.constant dense<0xFF800000> : vector<4xf32>
    %4 = vector.multi_reduction <maximumf>, %3, %cst_3 [1] : vector<4x4xf32> to vector<4xf32>
    %5 = vector.shape_cast %4 : vector<4xf32> to vector<4x1xf32>
    %6 = vector.extract_strided_slice %2 {offsets = [0, 4], sizes = [4, 4], strides = [1, 1]} : vector<4x16xf32> to vector<4x4xf32>
    %cst_4 = arith.constant dense<0xFF800000> : vector<4xf32>
    %7 = vector.multi_reduction <maximumf>, %6, %cst_4 [1] : vector<4x4xf32> to vector<4xf32>
    %8 = vector.shape_cast %7 : vector<4xf32> to vector<4x1xf32>
    %9 = vector.extract_strided_slice %2 {offsets = [0, 8], sizes = [4, 4], strides = [1, 1]} : vector<4x16xf32> to vector<4x4xf32>
    %cst_5 = arith.constant dense<0xFF800000> : vector<4xf32>
    %10 = vector.multi_reduction <maximumf>, %9, %cst_5 [1] : vector<4x4xf32> to vector<4xf32>
    %11 = vector.shape_cast %10 : vector<4xf32> to vector<4x1xf32>
    %12 = vector.extract_strided_slice %2 {offsets = [0, 12], sizes = [4, 4], strides = [1, 1]} : vector<4x16xf32> to vector<4x4xf32>
    %cst_6 = arith.constant dense<0xFF800000> : vector<4xf32>
    %13 = vector.multi_reduction <maximumf>, %12, %cst_6 [1] : vector<4x4xf32> to vector<4xf32>
    %14 = vector.shape_cast %13 : vector<4xf32> to vector<4x1xf32>
    %c0_7 = arith.constant 0 : index
    %c0_8 = arith.constant 0 : index
    %c4 = arith.constant 4 : index
    %c0_9 = arith.constant 0 : index
    %15 = vector.load %arg2[%c0_7, %c0_8, %c4, %c0_9] : memref<1x4x16x16xf32, #tpu.memory_space<vmem>>, vector<1x4x4x16xf32>
    %16 = vector.shape_cast %15 : vector<1x4x4x16xf32> to vector<4x4x16xf32>
    %cst_10 = arith.constant dense<0xFF800000> : vector<4x16xf32>
    %17 = vector.multi_reduction <maximumf>, %16, %cst_10 [1] : vector<4x4x16xf32> to vector<4x16xf32>
    %18 = vector.extract_strided_slice %17 {offsets = [0, 0], sizes = [4, 4], strides = [1, 1]} : vector<4x16xf32> to vector<4x4xf32>
    %cst_11 = arith.constant dense<0xFF800000> : vector<4xf32>
    %19 = vector.multi_reduction <maximumf>, %18, %cst_11 [1] : vector<4x4xf32> to vector<4xf32>
    %20 = vector.shape_cast %19 : vector<4xf32> to vector<4x1xf32>
    %21 = vector.extract_strided_slice %17 {offsets = [0, 4], sizes = [4, 4], strides = [1, 1]} : vector<4x16xf32> to vector<4x4xf32>
    %cst_12 = arith.constant dense<0xFF800000> : vector<4xf32>
    %22 = vector.multi_reduction <maximumf>, %21, %cst_12 [1] : vector<4x4xf32> to vector<4xf32>
    %23 = vector.shape_cast %22 : vector<4xf32> to vector<4x1xf32>
    %24 = vector.extract_strided_slice %17 {offsets = [0, 8], sizes = [4, 4], strides = [1, 1]} : vector<4x16xf32> to vector<4x4xf32>
    %cst_13 = arith.constant dense<0xFF800000> : vector<4xf32>
    %25 = vector.multi_reduction <maximumf>, %24, %cst_13 [1] : vector<4x4xf32> to vector<4xf32>
    %26 = vector.shape_cast %25 : vector<4xf32> to vector<4x1xf32>
    %27 = vector.extract_strided_slice %17 {offsets = [0, 12], sizes = [4, 4], strides = [1, 1]} : vector<4x16xf32> to vector<4x4xf32>
    %cst_14 = arith.constant dense<0xFF800000> : vector<4xf32>
    %28 = vector.multi_reduction <maximumf>, %27, %cst_14 [1] : vector<4x4xf32> to vector<4xf32>
    %29 = vector.shape_cast %28 : vector<4xf32> to vector<4x1xf32>
    %c0_15 = arith.constant 0 : index
    %c0_16 = arith.constant 0 : index
    %c8 = arith.constant 8 : index
    %c0_17 = arith.constant 0 : index
    %30 = vector.load %arg2[%c0_15, %c0_16, %c8, %c0_17] : memref<1x4x16x16xf32, #tpu.memory_space<vmem>>, vector<1x4x4x16xf32>
    %31 = vector.shape_cast %30 : vector<1x4x4x16xf32> to vector<4x4x16xf32>
    %cst_18 = arith.constant dense<0xFF800000> : vector<4x16xf32>
    %32 = vector.multi_reduction <maximumf>, %31, %cst_18 [1] : vector<4x4x16xf32> to vector<4x16xf32>
    %33 = vector.extract_strided_slice %32 {offsets = [0, 0], sizes = [4, 4], strides = [1, 1]} : vector<4x16xf32> to vector<4x4xf32>
    %cst_19 = arith.constant dense<0xFF800000> : vector<4xf32>
    %34 = vector.multi_reduction <maximumf>, %33, %cst_19 [1] : vector<4x4xf32> to vector<4xf32>
    %35 = vector.shape_cast %34 : vector<4xf32> to vector<4x1xf32>
    %36 = vector.extract_strided_slice %32 {offsets = [0, 4], sizes = [4, 4], strides = [1, 1]} : vector<4x16xf32> to vector<4x4xf32>
    %cst_20 = arith.constant dense<0xFF800000> : vector<4xf32>
    %37 = vector.multi_reduction <maximumf>, %36, %cst_20 [1] : vector<4x4xf32> to vector<4xf32>
    %38 = vector.shape_cast %37 : vector<4xf32> to vector<4x1xf32>
    %39 = vector.extract_strided_slice %32 {offsets = [0, 8], sizes = [4, 4], strides = [1, 1]} : vector<4x16xf32> to vector<4x4xf32>
    %cst_21 = arith.constant dense<0xFF800000> : vector<4xf32>
    %40 = vector.multi_reduction <maximumf>, %39, %cst_21 [1] : vector<4x4xf32> to vector<4xf32>
    %41 = vector.shape_cast %40 : vector<4xf32> to vector<4x1xf32>
    %42 = vector.extract_strided_slice %32 {offsets = [0, 12], sizes = [4, 4], strides = [1, 1]} : vector<4x16xf32> to vector<4x4xf32>
    %cst_22 = arith.constant dense<0xFF800000> : vector<4xf32>
    %43 = vector.multi_reduction <maximumf>, %42, %cst_22 [1] : vector<4x4xf32> to vector<4xf32>
    %44 = vector.shape_cast %43 : vector<4xf32> to vector<4x1xf32>
    %c0_23 = arith.constant 0 : index
    %c0_24 = arith.constant 0 : index
    %c12 = arith.constant 12 : index
    %c0_25 = arith.constant 0 : index
    %45 = vector.load %arg2[%c0_23, %c0_24, %c12, %c0_25] : memref<1x4x16x16xf32, #tpu.memory_space<vmem>>, vector<1x4x4x16xf32>
    %46 = vector.shape_cast %45 : vector<1x4x4x16xf32> to vector<4x4x16xf32>
    %cst_26 = arith.constant dense<0xFF800000> : vector<4x16xf32>
    %47 = vector.multi_reduction <maximumf>, %46, %cst_26 [1] : vector<4x4x16xf32> to vector<4x16xf32>
    %48 = vector.extract_strided_slice %47 {offsets = [0, 0], sizes = [4, 4], strides = [1, 1]} : vector<4x16xf32> to vector<4x4xf32>
    %cst_27 = arith.constant dense<0xFF800000> : vector<4xf32>
    %49 = vector.multi_reduction <maximumf>, %48, %cst_27 [1] : vector<4x4xf32> to vector<4xf32>
    %50 = vector.shape_cast %49 : vector<4xf32> to vector<4x1xf32>
    %51 = vector.extract_strided_slice %47 {offsets = [0, 4], sizes = [4, 4], strides = [1, 1]} : vector<4x16xf32> to vector<4x4xf32>
    %cst_28 = arith.constant dense<0xFF800000> : vector<4xf32>
    %52 = vector.multi_reduction <maximumf>, %51, %cst_28 [1] : vector<4x4xf32> to vector<4xf32>
    %53 = vector.shape_cast %52 : vector<4xf32> to vector<4x1xf32>
    %54 = vector.extract_strided_slice %47 {offsets = [0, 8], sizes = [4, 4], strides = [1, 1]} : vector<4x16xf32> to vector<4x4xf32>
    %cst_29 = arith.constant dense<0xFF800000> : vector<4xf32>
    %55 = vector.multi_reduction <maximumf>, %54, %cst_29 [1] : vector<4x4xf32> to vector<4xf32>
    %56 = vector.shape_cast %55 : vector<4xf32> to vector<4x1xf32>
    %57 = vector.extract_strided_slice %47 {offsets = [0, 12], sizes = [4, 4], strides = [1, 1]} : vector<4x16xf32> to vector<4x4xf32>
    %cst_30 = arith.constant dense<0xFF800000> : vector<4xf32>
    %58 = vector.multi_reduction <maximumf>, %57, %cst_30 [1] : vector<4x4xf32> to vector<4xf32>
    %59 = vector.shape_cast %58 : vector<4xf32> to vector<4x1xf32>
    %60 = arith.maximumf %5, %8 : vector<4x1xf32>
    %61 = arith.maximumf %60, %11 : vector<4x1xf32>
    %62 = arith.maximumf %61, %14 : vector<4x1xf32>
    %63 = arith.maximumf %62, %20 : vector<4x1xf32>
    %64 = arith.maximumf %63, %23 : vector<4x1xf32>
    %65 = arith.maximumf %64, %26 : vector<4x1xf32>
    %66 = arith.maximumf %65, %29 : vector<4x1xf32>
    %67 = arith.maximumf %66, %35 : vector<4x1xf32>
    %68 = arith.maximumf %67, %38 : vector<4x1xf32>
    %69 = arith.maximumf %68, %41 : vector<4x1xf32>
    %70 = arith.maximumf %69, %44 : vector<4x1xf32>
    %71 = arith.maximumf %70, %50 : vector<4x1xf32>
    %72 = arith.maximumf %71, %53 : vector<4x1xf32>
    %73 = arith.maximumf %72, %56 : vector<4x1xf32>
    %74 = arith.maximumf %73, %59 : vector<4x1xf32>
    %75 = arith.maximumf %5, %8 : vector<4x1xf32>
    %76 = arith.maximumf %75, %20 : vector<4x1xf32>
    %77 = arith.maximumf %76, %23 : vector<4x1xf32>
    %78 = arith.maximumf %11, %14 : vector<4x1xf32>
    %79 = arith.maximumf %78, %26 : vector<4x1xf32>
    %80 = arith.maximumf %79, %29 : vector<4x1xf32>
    %81 = arith.maximumf %35, %38 : vector<4x1xf32>
    %82 = arith.maximumf %81, %50 : vector<4x1xf32>
    %83 = arith.maximumf %82, %53 : vector<4x1xf32>
    %84 = arith.maximumf %41, %44 : vector<4x1xf32>
    %85 = arith.maximumf %84, %56 : vector<4x1xf32>
    %86 = arith.maximumf %85, %59 : vector<4x1xf32>
    %c0_31 = arith.constant 0 : index
    %c0_32 = arith.constant 0 : index
    %c0_33 = arith.constant 0 : index
    %87 = vector.load %arg3[%c0_31, %c0_32, %c0_33] : memref<1x4x1xf32, #tpu.memory_space<vmem>>, vector<1x4x1xf32>
    %88 = vector.shape_cast %87 : vector<1x4x1xf32> to vector<4x1xf32>
    %89 = vector.shape_cast %74 : vector<4x1xf32> to vector<1x4x1xf32>
    tpu.vector_store %arg3[%c0_31, %c0_32, %c0_33], %89 {strides = array<i32>} : memref<1x4x1xf32, #tpu.memory_space<vmem>>, vector<1x4x1xf32>,
    %90 = tpu.concatenate %77, %80, %83, %86 in 1 : vector<4x1xf32>, vector<4x1xf32>, vector<4x1xf32>, vector<4x1xf32> -> vector<4x4xf32>
    %c0_34 = arith.constant 0 : index
    %c0_35 = arith.constant 0 : index
    %c0_36 = arith.constant 0 : index
    %91 = vector.load %arg4[%c0_34, %c0_35, %c0_36] : memref<1x4x4xf32, #tpu.memory_space<vmem>>, vector<1x4x4xf32>
    %92 = vector.shape_cast %91 : vector<1x4x4xf32> to vector<4x4xf32>
    %93 = vector.shape_cast %90 : vector<4x4xf32> to vector<1x4x4xf32>
    tpu.vector_store %arg4[%c0_34, %c0_35, %c0_36], %93 {strides = array<i32>} : memref<1x4x4xf32, #tpu.memory_space<vmem>>, vector<1x4x4xf32>,
    %94 = tpu.concatenate %5, %8, %11, %14, %20, %23, %26, %29, %35, %38, %41, %44, %50, %53, %56, %59 in 1 : vector<4x1xf32>, vector<4x1xf32>, vector<4x1xf32>, vector<4x1xf32>, vector<4x1xf32>, vector<4x1xf32>, vector<4x1xf32>, vector<4x1xf32>, vector<4x1xf32>, vector<4x1xf32>, vector<4x1xf32>, vector<4x1xf32>, vector<4x1xf32>, vector<4x1xf32>, vector<4x1xf32>, vector<4x1xf32> -> vector<4x16xf32>
    %c0_37 = arith.constant 0 : index
    %c0_38 = arith.constant 0 : index
    %c0_39 = arith.constant 0 : index
    %95 = vector.load %arg5[%c0_37, %c0_38, %c0_39] : memref<1x4x16xf32, #tpu.memory_space<vmem>>, vector<1x4x16xf32>
    %96 = vector.shape_cast %95 : vector<1x4x16xf32> to vector<4x16xf32>
    %97 = vector.shape_cast %94 : vector<4x16xf32> to vector<1x4x16xf32>
    tpu.vector_store %arg5[%c0_37, %c0_38, %c0_39], %97 {strides = array<i32>} : memref<1x4x16xf32, #tpu.memory_space<vmem>>, vector<1x4x16xf32>,
    return
  }
  func.func @transform_0(%arg0: i32, %arg1: i32) -> (i32, i32, i32, i32) {
    %c0_i32 = arith.constant 0 : i32
    %c0_i32_0 = arith.constant 0 : i32
    %c0_i32_1 = arith.constant 0 : i32
    return %arg0, %arg1, %c0_i32, %c0_i32_0 : i32, i32, i32, i32
  }
  func.func @transform_1(%arg0: i32, %arg1: i32) -> (i32, i32, i32) {
    %c0_i32 = arith.constant 0 : i32
    %c0_i32_0 = arith.constant 0 : i32
    return %arg0, %arg1, %c0_i32 : i32, i32, i32
  }
  func.func @transform_2(%arg0: i32, %arg1: i32) -> (i32, i32, i32) {
    %c0_i32 = arith.constant 0 : i32
    %c0_i32_0 = arith.constant 0 : i32
    return %arg0, %arg1, %c0_i32 : i32, i32, i32
  }
  func.func @transform_3(%arg0: i32, %arg1: i32) -> (i32, i32, i32) {
    %c0_i32 = arith.constant 0 : i32
    %c0_i32_0 = arith.constant 0 : i32
    return %arg0, %arg1, %c0_i32 : i32, i32, i32
  }
}

</mosaic_0001>

<llo_original>
// kernel: tpu_custom_call.1
$region0: #{tpu_custom_call.1}
  #allocation0 [shape = 'u32[]', space=smem, size = 0x4, offset = 0x4, fixed_abs, tag = 'smem constant byte address 0x4 - core index']
  #allocation1 [shape = 'u32[144,128]{1,0:T(1,128)}', space=vmem, size = 0x12000, scoped, tag = 'internal scratch']
  %s0 = inlined_call_operand.hbm [shape: f32[2,4,16,16], index: 0, kind: input, shape index: {}]
  %s1 = inlined_call_operand.vmem [shape: f32[2,4,1], index: 1, kind: output, shape index: {0}]
  %s2 = inlined_call_operand.hbm [shape: f32[2,4,4], index: 2, kind: output, shape index: {1}]
  %s3 = inlined_call_operand.hbm [shape: f32[2,4,16], index: 3, kind: output, shape index: {2}]
  %4 = xla_tuple %s1, %s2, %s3
  %s5 = sld [smem:[#allocation0]]
  $region57: #{tpu_custom_call.1} parent=0
    _
  %s7 = ssub.s32 1, %s5
  %s8 = scalar_select 0, %s7, %s5
  $region1: #{tpu_custom_call.1} parent=0
    #allocation2 [shape = 'u8[65536]{0}', space=vmem, size = 0x10000, scoped, tag = 'input window, operand 0']
    #allocation3 [shape = 's32[2]{0}', space=sflag, size = 0x8, scoped, tag = 'scoped memory for tpu_custom_call.1']
    #allocation4 [shape = 's32[2]{0}', space=sflag, size = 0x8, scoped, tag = 'scoped memory for tpu_custom_call.1']
    #allocation5 [shape = 'u8[4096]{0}', space=vmem, size = 0x1000, scoped, tag = 'output window, operand 1']
    #allocation6 [shape = 'u8[4096]{0}', space=vmem, size = 0x1000, scoped, tag = 'output window, operand 2']
    #allocation7 [shape = 's32[2]{0}', space=sflag, size = 0x8, scoped, tag = 'scoped memory for tpu_custom_call.1']
    %9 = vsyncpa [#allocation3], 0
    %s10 = scalar_lea.sflag [#allocation3], 1
    %11 = vsyncpa %s10, 0
    %12 = vsyncpa [#allocation4], 0
    %s13 = scalar_lea.sflag [#allocation4], 1
    %14 = vsyncpa %s13, 0
    %15 = vsyncpa [#allocation7], 0
    %s16 = scalar_lea.sflag [#allocation7], 1
    %17 = vsyncpa %s16, 0
    loop: start=0, step=1, limit=4
    $region2: #{tpu_custom_call.1} parent=1 // loop_pre_header
      _
    $region3: #{tpu_custom_call.1} parent=1 // loop_header
      %s19 = sphi 0, %s23
      %p20 = scmp.ge.s32.totalorder %s19, 4
      %s26 = sphi 0, %s38
      %s27 = sphi 0, %s34
      %s28 = sphi 0, %s26
      %s29 = sphi 0, %s27
      %s30 = sphi 0, %s28
      %s31 = sphi 0, %s29
      %s43 = sphi 0, %s45
      %s46 = sphi 0, %s43
      %s47 = sphi 0, %s46
      %s63 = sphi 0, %s47
      %s71 = sphi 0, %s73
      %s74 = sphi 0, %s71
      %s75 = sphi 0, %s74
      %s91 = sphi 0, %s75
      %s99 = sphi 0, %s101
      %s102 = sphi 0, %s99
      %s103 = sphi 0, %s102
      %s119 = sphi 0, %s103
      %s127 = sphi 0, %s129
      %s130 = sphi 0, %s127
      %s131 = sphi 0, %s130
      %s147 = sphi 0, %s131
    $region4: #{tpu_custom_call.1} parent=1 // loop_header_branch
      %22 = sbr.rel (%p20) target = $region8
    $region5: #{tpu_custom_call.1} parent=1 // loop_body
      %s24 = ssub.s32 %s19, 1
      %s25 = ssub.s32 %s19, 2
      %s32 = sadd.s32 1, %s27
      %p33 = scmp.ge.s32.totalorder %s32, 1
      %s34 = scalar_select %p33, 0, %s32
      %s35 = sadd.s32 1, %s26
      %s36 = scalar_select %p33, %s35, %s26
      %p37 = scmp.ge.s32.totalorder %s36, 2
      %s38 = scalar_select %p37, 0, %s36
      %s39 = ssub.s32 %s26, %s38
      %s40 = ssub.s32 %s27, %s34
      %s41 = sor.u32 %s39, %s40
      %p42 = scmp.eq.s32.totalorder %s41, 0
      %s44 = sadd.s32 %s43, 1
      %s45 = scalar_select %p42, %s43, %s44
      %p48 = pneg %p42
      %p49 = scmp.eq.s32.totalorder %s19, 1
      %p50 = por %p48, %p49
      %p51 = scmp.ne.s32.totalorder %s43, %s46
      %p52 = scmp.eq.s32.totalorder %s19, 0
      %p53 = por %p51, %p52
      %p54 = scmp.ne.s32.totalorder %s43, %s46
      %p55 = scmp.eq.s32.totalorder %s24, 1
      %p56 = por %p54, %p55
      %p57 = scmp.ne.s32.totalorder %s46, %s47
      %p58 = scmp.eq.s32.totalorder %s24, 0
      %p59 = por %p57, %p58
      %p60 = scmp.ne.s32.totalorder %s46, %s47
      %p61 = scmp.eq.s32.totalorder %s25, 1
      %p62 = por %p60, %p61
      %p64 = scmp.ne.s32.totalorder %s47, %s63
      %p65 = scmp.eq.s32.totalorder %s25, 0
      %p66 = por %p64, %p65
      %s67 = ssub.s32 %s26, %s38
      %s68 = ssub.s32 %s27, %s34
      %s69 = sor.u32 %s67, %s68
      %p70 = scmp.eq.s32.totalorder %s69, 0
      %s72 = sadd.s32 %s71, 1
      %s73 = scalar_select %p70, %s71, %s72
      %p76 = pneg %p70
      %p77 = scmp.eq.s32.totalorder %s19, 1
      %p78 = por %p76, %p77
      %p79 = scmp.ne.s32.totalorder %s71, %s74
      %p80 = scmp.eq.s32.totalorder %s19, 0
      %p81 = por %p79, %p80
      %p82 = scmp.ne.s32.totalorder %s71, %s74
      %p83 = scmp.eq.s32.totalorder %s24, 1
      %p84 = por %p82, %p83
      %p85 = scmp.ne.s32.totalorder %s74, %s75
      %p86 = scmp.eq.s32.totalorder %s24, 0
      %p87 = por %p85, %p86
      %p88 = scmp.ne.s32.totalorder %s74, %s75
      %p89 = scmp.eq.s32.totalorder %s25, 1
      %p90 = por %p88, %p89
      %p92 = scmp.ne.s32.totalorder %s75, %s91
      %p93 = scmp.eq.s32.totalorder %s25, 0
      %p94 = por %p92, %p93
      %s95 = ssub.s32 %s26, %s38
      %s96 = ssub.s32 %s27, %s34
      %s97 = sor.u32 %s95, %s96
      %p98 = scmp.eq.s32.totalorder %s97, 0
      %s100 = sadd.s32 %s99, 1
      %s101 = scalar_select %p98, %s99, %s100
      %p104 = pneg %p98
      %p105 = scmp.eq.s32.totalorder %s19, 1
      %p106 = por %p104, %p105
      %p107 = scmp.ne.s32.totalorder %s99, %s102
      %p108 = scmp.eq.s32.totalorder %s19, 0
      %p109 = por %p107, %p108
      %p110 = scmp.ne.s32.totalorder %s99, %s102
      %p111 = scmp.eq.s32.totalorder %s24, 1
      %p112 = por %p110, %p111
      %p113 = scmp.ne.s32.totalorder %s102, %s103
      %p114 = scmp.eq.s32.totalorder %s24, 0
      %p115 = por %p113, %p114
      %p116 = scmp.ne.s32.totalorder %s102, %s103
      %p117 = scmp.eq.s32.totalorder %s25, 1
      %p118 = por %p116, %p117
      %p120 = scmp.ne.s32.totalorder %s103, %s119
      %p121 = scmp.eq.s32.totalorder %s25, 0
      %p122 = por %p120, %p121
      %s123 = ssub.s32 %s26, %s38
      %s124 = ssub.s32 %s27, %s34
      %s125 = sor.u32 %s123, %s124
      %p126 = scmp.eq.s32.totalorder %s125, 0
      %s128 = sadd.s32 %s127, 1
      %s129 = scalar_select %p126, %s127, %s128
      %p132 = pneg %p126
      %p133 = scmp.eq.s32.totalorder %s19, 1
      %p134 = por %p132, %p133
      %p135 = scmp.ne.s32.totalorder %s127, %s130
      %p136 = scmp.eq.s32.totalorder %s19, 0
      %p137 = por %p135, %p136
      %p138 = scmp.ne.s32.totalorder %s127, %s130
      %p139 = scmp.eq.s32.totalorder %s24, 1
      %p140 = por %p138, %p139
      %p141 = scmp.ne.s32.totalorder %s130, %s131
      %p142 = scmp.eq.s32.totalorder %s24, 0
      %p143 = por %p141, %p142
      %p144 = scmp.ne.s32.totalorder %s130, %s131
      %p145 = scmp.eq.s32.totalorder %s25, 1
      %p146 = por %p144, %p145
      %p148 = scmp.ne.s32.totalorder %s131, %s147
      %p149 = scmp.eq.s32.totalorder %s25, 0
      %p150 = por %p148, %p149
      %p151 = scmp.le.s32.totalorder 1, %s19
      %p152 = scmp.lt.s32.totalorder %s19, 3
      %p153 = pnand %p151, %p152
      %p154 = pneg %p153
      // Predicated region
      $region9: #{tpu_custom_call.1} parent=5 // pred_check
        _
      $region10: #{tpu_custom_call.1} parent=5 // pred_check_branch
        %156 = sbr.rel (%p153) target = $region12
      $region11: #{tpu_custom_call.1} parent=5 // pred_region
        %s157 = ssub.s32 %s19, 1
      $region12: #{tpu_custom_call.1} parent=5 // pred_fallthru
        _
      %p158 = scmp.lt.s32.totalorder %s19, 2
      // Predicated region
      $region13: #{tpu_custom_call.1} parent=5 // pred_check
        %p159 = pneg %p158
      $region14: #{tpu_custom_call.1} parent=5 // pred_check_branch
        %161 = sbr.rel (%p159) target = $region16
      $region15: #{tpu_custom_call.1} parent=5 // pred_region
        // Predicated region
        $region17: #{tpu_custom_call.1} parent=15 // pred_check
          %p162 = pneg %p53
        $region18: #{tpu_custom_call.1} parent=15 // pred_check_branch
          %164 = sbr.rel (%p162) target = $region20
        $region19: #{tpu_custom_call.1} parent=15 // pred_region
          %s165 = sand.u32 %s43, 1
          %s166 = scalar_lea.sflag [#allocation3], %s165
          %s167 = sand.u32 %s43, 1
          %s168 = smul.addr %s167, 64
          %s169 = scalar_lea.vmem [#allocation2], %s168
          %s170 = smul.u32 4, %s27
          %s172 = ssub.s32 1024, 1024
          %173 = vsyncadd %s166, %s172
          %s174 = smul.addr %s170, 2
          %s175 = smul.addr %s26, 8
          %s176 = sadd.s32 %s174, %s175
          %s177 = smul.addr %s176, 128
          %s178 = scalar_lea.hbm %s0, %s177
          %s179 = sshll.u32 %s169, 4
          %s180 = int_to_ptr.vmem [resolvable:$true] %s179
          %185 = dma.hbm_to_vmem [thread:$0]  %s178, 1024, %s180, %s166, 128, 128, 8
        $region20: #{tpu_custom_call.1} parent=15 // pred_fallthru
          _
      $region16: #{tpu_custom_call.1} parent=5 // pred_fallthru
        _
      %p186 = scmp.le.s32.totalorder 1, %s19
      %p187 = scmp.lt.s32.totalorder %s19, 3
      %p188 = pnand %p186, %p187
      %p189 = pneg %p188
      // Predicated region
      $region21: #{tpu_custom_call.1} parent=5 // pred_check
        _
      $region22: #{tpu_custom_call.1} parent=5 // pred_check_branch
        %191 = sbr.rel (%p188) target = $region24
      $region23: #{tpu_custom_call.1} parent=5 // pred_region
        %s192 = ssub.s32 %s19, 1
        %s193 = sand.u32 %s46, 1
        %s194 = scalar_lea.sflag [#allocation3], %s193
        %s195 = sand.u32 %s46, 1
        %s196 = smul.addr %s195, 64
        %s197 = scalar_lea.vmem [#allocation2], %s196
        // Predicated region
        $region25: #{tpu_custom_call.1} parent=23 // pred_check
          %p198 = pneg %p59
        $region26: #{tpu_custom_call.1} parent=23 // pred_check_branch
          %200 = sbr.rel (%p198) target = $region28
        $region27: #{tpu_custom_call.1} parent=23 // pred_region
          %201 = dma.done %s194, 1024
        $region28: #{tpu_custom_call.1} parent=23 // pred_fallthru
          _
        %s202 = sand.u32 %s46, 1
        %s203 = scalar_lea.sflag [#allocation3], %s202
        %s204 = sand.u32 %s46, 1
        %s205 = smul.addr %s204, 64
        %s206 = scalar_lea.vmem [#allocation2], %s205
        %p207 = pneg %p59
        %p208 = pneg %p56
        %p209 = pneg %p87
        %p210 = pneg %p84
        %p211 = scmp.lt.s32.totalorder %s28, 1
        %s212 = scalar_select %p211, %s28, 1
        %p213 = scmp.lt.s32.totalorder %s29, 0
        %s214 = scalar_select %p213, %s29, 0
        %s215 = sadd.s32 %s214, %s212
        %s216 = smul.addr %s215, 4
        %s217 = scalar_lea.vmem %s1, %s216
        %p218 = pneg %p115
        %p219 = pneg %p112
        %s220 = sand.u32 %s102, 1
        %s221 = scalar_lea.sflag [#allocation4], %s220
        %s222 = sand.u32 %s102, 1
        %s223 = smul.addr %s222, 4
        %s224 = scalar_lea.vmem [#allocation5], %s223
        %p225 = pneg %p143
        %p226 = pneg %p140
        %s227 = sand.u32 %s130, 1
        %s228 = scalar_lea.sflag [#allocation7], %s227
        %s229 = sand.u32 %s130, 1
        %s230 = smul.addr %s229, 4
        %s231 = scalar_lea.vmem [#allocation6], %s230
        %s232 = smul.u32 4, %s29
        %p233 = scmp.lt.s32.totalorder %s28, 1
        %s234 = scalar_select %p233, %s28, 1
        %p235 = scmp.lt.s32.totalorder %s29, 0
        %s236 = scalar_select %p235, %s29, 0
        %s237 = sadd.s32 %s236, %s234
        %s238 = smul.addr %s237, 4
        %s239 = scalar_lea.vmem %s1, %s238
        %v240 = vld [vmem:[%s197] sm:$0xf]
        %v241 = vld [vmem:[%s197 + $0x10] sm:$0xf]
        %v242 = vld [vmem:[%s197 + $0x20] sm:$0xf]
        %v243 = vld [vmem:[%s197 + $0x30] sm:$0xf]
        %vm244 = vcmask 125952
        %v245 = vsel %vm244, %v240, -inf
        %v246 = vrot.slane %v245, 4
        %v247 = vmax.f32 %v245, %v246
        %v248 = vrot.slane %v247, 2
        %v249 = vmax.f32 %v247, %v248
        %v250 = vrot.slane %v249, 1
        %v251 = vmax.f32 %v249, %v250
        %v252 = vsel %vm244, %v241, -inf
        %v253 = vrot.slane %v252, 4
        %v254 = vmax.f32 %v252, %v253
        %v255 = vrot.slane %v254, 2
        %v256 = vmax.f32 %v254, %v255
        %v257 = vrot.slane %v256, 1
        %v258 = vmax.f32 %v256, %v257
        %v259 = vsel %vm244, %v242, -inf
        %v260 = vrot.slane %v259, 4
        %v261 = vmax.f32 %v259, %v260
        %v262 = vrot.slane %v261, 2
        %v263 = vmax.f32 %v261, %v262
        %v264 = vrot.slane %v263, 1
        %v265 = vmax.f32 %v263, %v264
        %v266 = vsel %vm244, %v243, -inf
        %v267 = vrot.slane %v266, 4
        %v268 = vmax.f32 %v266, %v267
        %v269 = vrot.slane %v268, 2
        %v270 = vmax.f32 %v268, %v269
        %v271 = vrot.slane %v270, 1
        %v272 = vmax.f32 %v270, %v271
        %vm277 = vcmask 1041409
        %v278 = vsel %vm277, %v258, %v251
        %vm279 = vcmask 1042434
        %v280 = vsel %vm279, %v265, %v278
        %vm281 = vcmask 1043459
        %v282 = vsel %vm281, %v272, %v280
        %vm284 = vcmask 27648
        %v285 = vsel %vm284, %v282, -inf
        %286 = vmax.xlane.f32.xlu0 %v285
        %v287 = vpop.xlane.xlu0 %286
        %vm288 = vcmask 60448
        %v289 = vsel %vm288, %v282, -inf
        %290 = vmax.xlane.f32.xlu0 %v289
        %v291 = vpop.xlane.xlu0 %290
        %vm292 = vcmask 93248
        %v293 = vsel %vm292, %v282, -inf
        %294 = vmax.xlane.f32.xlu0 %v293
        %v295 = vpop.xlane.xlu0 %294
        %vm296 = vcmask 126048
        %v297 = vsel %vm296, %v282, -inf
        %298 = vmax.xlane.f32.xlu0 %v297
        %v299 = vpop.xlane.xlu0 %298
        %v300 = vld [vmem:[%s197 + $0x4] sm:$0xf]
        %v301 = vld [vmem:[%s197 + $0x14] sm:$0xf]
        %v302 = vld [vmem:[%s197 + $0x24] sm:$0xf]
        %v303 = vld [vmem:[%s197 + $0x34] sm:$0xf]
        %v304 = vsel %vm244, %v300, -inf
        %v305 = vrot.slane %v304, 4
        %v306 = vmax.f32 %v304, %v305
        %v307 = vrot.slane %v306, 2
        %v308 = vmax.f32 %v306, %v307
        %v309 = vrot.slane %v308, 1
        %v310 = vmax.f32 %v308, %v309
        %v311 = vsel %vm244, %v301, -inf
        %v312 = vrot.slane %v311, 4
        %v313 = vmax.f32 %v311, %v312
        %v314 = vrot.slane %v313, 2
        %v315 = vmax.f32 %v313, %v314
        %v316 = vrot.slane %v315, 1
        %v317 = vmax.f32 %v315, %v316
        %v318 = vsel %vm244, %v302, -inf
        %v319 = vrot.slane %v318, 4
        %v320 = vmax.f32 %v318, %v319
        %v321 = vrot.slane %v320, 2
        %v322 = vmax.f32 %v320, %v321
        %v323 = vrot.slane %v322, 1
        %v324 = vmax.f32 %v322, %v323
        %v325 = vsel %vm244, %v303, -inf
        %v326 = vrot.slane %v325, 4
        %v327 = vmax.f32 %v325, %v326
        %v328 = vrot.slane %v327, 2
        %v329 = vmax.f32 %v327, %v328
        %v330 = vrot.slane %v329, 1
        %v331 = vmax.f32 %v329, %v330
        %v336 = vsel %vm277, %v317, %v310
        %v337 = vsel %vm279, %v324, %v336
        %v338 = vsel %vm281, %v331, %v337
        %v340 = vsel %vm284, %v338, -inf
        %341 = vmax.xlane.f32.xlu0 %v340
        %v342 = vpop.xlane.xlu0 %341
        %v343 = vsel %vm288, %v338, -inf
        %344 = vmax.xlane.f32.xlu0 %v343
        %v345 = vpop.xlane.xlu0 %344
        %v346 = vsel %vm292, %v338, -inf
        %347 = vmax.xlane.f32.xlu0 %v346
        %v348 = vpop.xlane.xlu0 %347
        %v349 = vsel %vm296, %v338, -inf
        %350 = vmax.xlane.f32.xlu0 %v349
        %v351 = vpop.xlane.xlu0 %350
        %v352 = vld [vmem:[%s197 + $0x8] sm:$0xf]
        %v353 = vld [vmem:[%s197 + $0x18] sm:$0xf]
        %v354 = vld [vmem:[%s197 + $0x28] sm:$0xf]
        %v355 = vld [vmem:[%s197 + $0x38] sm:$0xf]
        %v356 = vsel %vm244, %v352, -inf
        %v357 = vrot.slane %v356, 4
        %v358 = vmax.f32 %v356, %v357
        %v359 = vrot.slane %v358, 2
        %v360 = vmax.f32 %v358, %v359
        %v361 = vrot.slane %v360, 1
        %v362 = vmax.f32 %v360, %v361
        %v363 = vsel %vm244, %v353, -inf
        %v364 = vrot.slane %v363, 4
        %v365 = vmax.f32 %v363, %v364
        %v366 = vrot.slane %v365, 2
        %v367 = vmax.f32 %v365, %v366
        %v368 = vrot.slane %v367, 1
        %v369 = vmax.f32 %v367, %v368
        %v370 = vsel %vm244, %v354, -inf
        %v371 = vrot.slane %v370, 4
        %v372 = vmax.f32 %v370, %v371
        %v373 = vrot.slane %v372, 2
        %v374 = vmax.f32 %v372, %v373
        %v375 = vrot.slane %v374, 1
        %v376 = vmax.f32 %v374, %v375
        %v377 = vsel %vm244, %v355, -inf
        %v378 = vrot.slane %v377, 4
        %v379 = vmax.f32 %v377, %v378
        %v380 = vrot.slane %v379, 2
        %v381 = vmax.f32 %v379, %v380
        %v382 = vrot.slane %v381, 1
        %v383 = vmax.f32 %v381, %v382
        %v388 = vsel %vm277, %v369, %v362
        %v389 = vsel %vm279, %v376, %v388
        %v390 = vsel %vm281, %v383, %v389
        %v392 = vsel %vm284, %v390, -inf
        %393 = vmax.xlane.f32.xlu0 %v392
        %v394 = vpop.xlane.xlu0 %393
        %v395 = vsel %vm288, %v390, -inf
        %396 = vmax.xlane.f32.xlu0 %v395
        %v397 = vpop.xlane.xlu0 %396
        %v398 = vsel %vm292, %v390, -inf
        %399 = vmax.xlane.f32.xlu0 %v398
        %v400 = vpop.xlane.xlu0 %399
        %v401 = vsel %vm296, %v390, -inf
        %402 = vmax.xlane.f32.xlu0 %v401
        %v403 = vpop.xlane.xlu0 %402
        %v404 = vld [vmem:[%s197 + $0xc] sm:$0xf]
        %v405 = vld [vmem:[%s197 + $0x1c] sm:$0xf]
        %v406 = vld [vmem:[%s197 + $0x2c] sm:$0xf]
        %v407 = vld [vmem:[%s197 + $0x3c] sm:$0xf]
        %v408 = vsel %vm244, %v404, -inf
        %v409 = vrot.slane %v408, 4
        %v410 = vmax.f32 %v408, %v409
        %v411 = vrot.slane %v410, 2
        %v412 = vmax.f32 %v410, %v411
        %v413 = vrot.slane %v412, 1
        %v414 = vmax.f32 %v412, %v413
        %v415 = vsel %vm244, %v405, -inf
        %v416 = vrot.slane %v415, 4
        %v417 = vmax.f32 %v415, %v416
        %v418 = vrot.slane %v417, 2
        %v419 = vmax.f32 %v417, %v418
        %v420 = vrot.slane %v419, 1
        %v421 = vmax.f32 %v419, %v420
        %v422 = vsel %vm244, %v406, -inf
        %v423 = vrot.slane %v422, 4
        %v424 = vmax.f32 %v422, %v423
        %v425 = vrot.slane %v424, 2
        %v426 = vmax.f32 %v424, %v425
        %v427 = vrot.slane %v426, 1
        %v428 = vmax.f32 %v426, %v427
        %v429 = vsel %vm244, %v407, -inf
        %v430 = vrot.slane %v429, 4
        %v431 = vmax.f32 %v429, %v430
        %v432 = vrot.slane %v431, 2
        %v433 = vmax.f32 %v431, %v432
        %v434 = vrot.slane %v433, 1
        %v435 = vmax.f32 %v433, %v434
        %v440 = vsel %vm277, %v421, %v414
        %v441 = vsel %vm279, %v428, %v440
        %v442 = vsel %vm281, %v435, %v441
        %v444 = vsel %vm284, %v442, -inf
        %445 = vmax.xlane.f32.xlu0 %v444
        %v446 = vpop.xlane.xlu0 %445
        %v447 = vsel %vm288, %v442, -inf
        %448 = vmax.xlane.f32.xlu0 %v447
        %v449 = vpop.xlane.xlu0 %448
        %v450 = vsel %vm292, %v442, -inf
        %451 = vmax.xlane.f32.xlu0 %v450
        %v452 = vpop.xlane.xlu0 %451
        %v453 = vsel %vm296, %v442, -inf
        %454 = vmax.xlane.f32.xlu0 %v453
        %v455 = vpop.xlane.xlu0 %454
        %v456 = vmax.f32 %v287, %v291
        %v457 = vmax.f32 %v456, %v295
        %v458 = vmax.f32 %v457, %v299
        %v459 = vmax.f32 %v458, %v342
        %v460 = vmax.f32 %v459, %v345
        %v461 = vmax.f32 %v460, %v348
        %v462 = vmax.f32 %v461, %v351
        %v463 = vmax.f32 %v462, %v394
        %v464 = vmax.f32 %v463, %v397
        %v465 = vmax.f32 %v464, %v400
        %v466 = vmax.f32 %v465, %v403
        %v467 = vmax.f32 %v466, %v446
        %v468 = vmax.f32 %v467, %v449
        %v469 = vmax.f32 %v468, %v452
        %v470 = vmax.f32 %v469, %v455
        %v471 = vmax.f32 %v456, %v342
        %v472 = vmax.f32 %v471, %v345
        %v473 = vmax.f32 %v295, %v299
        %v474 = vmax.f32 %v473, %v348
        %v475 = vmax.f32 %v474, %v351
        %v476 = vmax.f32 %v394, %v397
        %v477 = vmax.f32 %v476, %v446
        %v478 = vmax.f32 %v477, %v449
        %v479 = vmax.f32 %v400, %v403
        %v480 = vmax.f32 %v479, %v452
        %v481 = vmax.f32 %v480, %v455
        %vm482 = vcmask 3072
        %483 = vst.msk [vmem:[%s239] sm:$0xf] %vm482, %v470
        %vm484 = vcmask 7168
        %v485 = vsel %vm484, %v472, %v475
        %vm486 = vcmask 15360
        %v487 = vsel %vm486, %v485, %v478
        %vm488 = vcmask 23552
        %v489 = vsel %vm488, %v487, %v481
        %490 = vst.msk [vmem:[%s224] sm:$0xf] %vm284, %v489
        %v491 = vsel %vm484, %v287, %v291
        %v492 = vsel %vm486, %v491, %v295
        %v493 = vsel %vm488, %v492, %v299
        %vm494 = vcmask 31744
        %v495 = vsel %vm494, %v493, %v342
        %vm496 = vcmask 39936
        %v497 = vsel %vm496, %v495, %v345
        %vm498 = vcmask 48128
        %v499 = vsel %vm498, %v497, %v348
        %vm500 = vcmask 56320
        %v501 = vsel %vm500, %v499, %v351
        %vm502 = vcmask 64512
        %v503 = vsel %vm502, %v501, %v394
        %vm504 = vcmask 72704
        %v505 = vsel %vm504, %v503, %v397
        %vm506 = vcmask 80896
        %v507 = vsel %vm506, %v505, %v400
        %vm508 = vcmask 89088
        %v509 = vsel %vm508, %v507, %v403
        %vm510 = vcmask 97280
        %v511 = vsel %vm510, %v509, %v446
        %vm512 = vcmask 105472
        %v513 = vsel %vm512, %v511, %v449
        %vm514 = vcmask 113664
        %v515 = vsel %vm514, %v513, %v452
        %vm516 = vcmask 121856
        %v517 = vsel %vm516, %v515, %v455
        %518 = vst.msk [vmem:[%s231] sm:$0xf] %vm244, %v517
        %p519 = scmp.lt.s32.totalorder %s28, 1
        %s520 = scalar_select %p519, %s28, 1
        %p521 = scmp.lt.s32.totalorder %s29, 0
        %s522 = scalar_select %p521, %s29, 0
        %s523 = sadd.s32 %s522, %s520
        %s524 = smul.addr %s523, 4
        %s525 = scalar_lea.vmem %s1, %s524
        %s526 = sand.u32 %s102, 1
        %s527 = scalar_lea.sflag [#allocation4], %s526
        %s528 = sand.u32 %s102, 1
        %s529 = smul.addr %s528, 4
        %s530 = scalar_lea.vmem [#allocation5], %s529
        %s531 = sand.u32 %s130, 1
        %s532 = scalar_lea.sflag [#allocation7], %s531
        %s533 = sand.u32 %s130, 1
        %s534 = smul.addr %s533, 4
        %s535 = scalar_lea.vmem [#allocation6], %s534
        // Predicated region
        $region29: #{tpu_custom_call.1} parent=23 // pred_check
          %p536 = pneg %p84
        $region30: #{tpu_custom_call.1} parent=23 // pred_check_branch
          %538 = sbr.rel (%p536) target = $region32
        $region31: #{tpu_custom_call.1} parent=23 // pred_region
          _
        $region32: #{tpu_custom_call.1} parent=23 // pred_fallthru
          _
        // Predicated region
        $region33: #{tpu_custom_call.1} parent=23 // pred_check
          %p539 = pneg %p112
        $region34: #{tpu_custom_call.1} parent=23 // pred_check_branch
          %541 = sbr.rel (%p539) target = $region36
        $region35: #{tpu_custom_call.1} parent=23 // pred_region
          %s543 = ssub.s32 64, 64
          %544 = vsyncadd %s527, %s543
          %s545 = sadd.s32 %s29, %s28
          %s546 = smul.addr %s545, 64
          %s547 = scalar_lea.hbm %s2, %s546
          %s549 = sshll.u32 %s530, 4
          %s550 = int_to_ptr.vmem [resolvable:$true] %s549
          %552 = dma.vmem_to_hbm [thread:$0]  %s550, 64, %s547, %s527
        $region36: #{tpu_custom_call.1} parent=23 // pred_fallthru
          _
        // Predicated region
        $region37: #{tpu_custom_call.1} parent=23 // pred_check
          %p553 = pneg %p140
        $region38: #{tpu_custom_call.1} parent=23 // pred_check_branch
          %555 = sbr.rel (%p553) target = $region40
        $region39: #{tpu_custom_call.1} parent=23 // pred_region
          %s557 = ssub.s32 64, 64
          %558 = vsyncadd %s532, %s557
          %s559 = sadd.s32 %s29, %s28
          %s560 = smul.addr %s559, 64
          %s561 = scalar_lea.hbm %s3, %s560
          %s563 = sshll.u32 %s535, 4
          %s564 = int_to_ptr.vmem [resolvable:$true] %s563
          %566 = dma.vmem_to_hbm [thread:$0]  %s564, 64, %s561, %s532
        $region40: #{tpu_custom_call.1} parent=23 // pred_fallthru
          _
      $region24: #{tpu_custom_call.1} parent=5 // pred_fallthru
        _
      %p567 = scmp.le.s32.totalorder 2, %s19
      // Predicated region
      $region41: #{tpu_custom_call.1} parent=5 // pred_check
        %p568 = pneg %p567
      $region42: #{tpu_custom_call.1} parent=5 // pred_check_branch
        %570 = sbr.rel (%p568) target = $region44
      $region43: #{tpu_custom_call.1} parent=5 // pred_region
        %s571 = ssub.s32 %s19, 2
        // Predicated region
        $region45: #{tpu_custom_call.1} parent=43 // pred_check
          %p572 = pneg %p90
        $region46: #{tpu_custom_call.1} parent=43 // pred_check_branch
          %574 = sbr.rel (%p572) target = $region48
        $region47: #{tpu_custom_call.1} parent=43 // pred_region
          %p575 = scmp.lt.s32.totalorder %s30, 1
          %s576 = scalar_select %p575, %s30, 1
          %p577 = scmp.lt.s32.totalorder %s31, 0
          %s578 = scalar_select %p577, %s31, 0
          %s579 = sadd.s32 %s578, %s576
          %s580 = smul.addr %s579, 4
          %s581 = scalar_lea.vmem %s1, %s580
        $region48: #{tpu_custom_call.1} parent=43 // pred_fallthru
          _
        // Predicated region
        $region49: #{tpu_custom_call.1} parent=43 // pred_check
          %p582 = pneg %p118
        $region50: #{tpu_custom_call.1} parent=43 // pred_check_branch
          %584 = sbr.rel (%p582) target = $region52
        $region51: #{tpu_custom_call.1} parent=43 // pred_region
          %s585 = sand.u32 %s103, 1
          %s586 = scalar_lea.sflag [#allocation4], %s585
          %s587 = sand.u32 %s103, 1
          %s588 = smul.addr %s587, 4
          %s589 = scalar_lea.vmem [#allocation5], %s588
          %590 = dma.done %s586, 64
        $region52: #{tpu_custom_call.1} parent=43 // pred_fallthru
          _
        // Predicated region
        $region53: #{tpu_custom_call.1} parent=43 // pred_check
          %p591 = pneg %p146
        $region54: #{tpu_custom_call.1} parent=43 // pred_check_branch
          %593 = sbr.rel (%p591) target = $region56
        $region55: #{tpu_custom_call.1} parent=43 // pred_region
          %s594 = sand.u32 %s131, 1
          %s595 = scalar_lea.sflag [#allocation7], %s594
          %s596 = sand.u32 %s131, 1
          %s597 = smul.addr %s596, 4
          %s598 = scalar_lea.vmem [#allocation6], %s597
          %599 = dma.done %s595, 64
        $region56: #{tpu_custom_call.1} parent=43 // pred_fallthru
          _
      $region44: #{tpu_custom_call.1} parent=5 // pred_fallthru
        _
    $region6: #{tpu_custom_call.1} parent=1 // loop_footer
      %s23 = sadd.s32 1, %s19
    $region7: #{tpu_custom_call.1} parent=1 // loop_footer_branch
      %18 = sbr.rel target = $region3
    $region8: #{tpu_custom_call.1} parent=1 // loop_exit
      _
    %600 = vsyncpa [#allocation3], 1
    %s601 = scalar_lea.sflag [#allocation3], 1
    %602 = vsyncpa %s601, 1
    %603 = vsyncpa [#allocation4], 1
    %s604 = scalar_lea.sflag [#allocation4], 1
    %605 = vsyncpa %s604, 1
    %606 = vsyncpa [#allocation7], 1
    %s607 = scalar_lea.sflag [#allocation7], 1
    %608 = vsyncpa %s607, 1

</llo_original>
